<compile_context>
chip_gen: v7x
topology: tpu7x:2x2x1
jax: 0.10.0
libtpu: 0.0.40
codegen_flags: <defaults>
</compile_context>

<pallas_src>
import numpy as np
import jax
import jax.numpy as jnp
from jax.experimental import pallas as pl
from jax.experimental.pallas import tpu as pltpu


def _round_up(x, m):
    return ((x + m - 1) // m) * m


def _make_apcnn_kernel(tb, l_pad, l_actual, v_pad, d_pad):
    def kernel(ids_ref, emb_ref, w_ref, b_ref, o_ref):
        rows = tb * l_pad
        ids = ids_ref[...]                                         # (rows, 1) int32

        # Fused embedding gather: one-hot (rows, Vp) @ table (Vp, Dp) on the MXU.
        # TODO(synk): for large vocabularies replace this with a scalar-prefetch /
        # manual-DMA row gather (memory_space=pl.ANY); the one-hot trick only pays
        # off for small, VMEM-resident tables.
        onehot = (ids == jax.lax.broadcasted_iota(jnp.int32, (rows, v_pad), 1)
                  ).astype(emb_ref.dtype)
        x = jnp.dot(onehot, emb_ref[...], preferred_element_type=jnp.float32)

        # 1x1 Conv1d over all positions == one lane-dense (rows, Dp) @ (Dp, Dp).
        y = jnp.dot(x.astype(w_ref.dtype), w_ref[...],
                    preferred_element_type=jnp.float32)
        y = jnp.tanh(y + b_ref[...])                               # EUP, f32 accum

        y3 = y.reshape(tb, l_pad, d_pad)                           # Lp % 8 == 0 -> free
        if l_pad != l_actual:
            # Padded sequence positions would add tanh(bias); mask them out.
            pos = jax.lax.broadcasted_iota(jnp.int32, (1, l_pad, 1), 1)
            y3 = jnp.where(pos < l_actual, y3, 0.0)
        o_ref[...] = jnp.sum(y3, axis=1).astype(o_ref.dtype)       # (tb, Dp)
    return kernel


def init_params(embed_dim, n_word, bound):
    # Deterministic init identical to the PyTorch module's __init__ (the
    # embedding weight is replaced by nn.Parameter, so the padding_idx row is
    # NOT zeroed).
    emb = np.random.RandomState(122).uniform(
        -bound, bound, (n_word + 1, embed_dim)).astype(np.float32)
    w = np.random.RandomState(130).uniform(
        -bound, bound, (embed_dim, embed_dim, 1)).astype(np.float32)
    b = np.zeros(embed_dim, np.float32)
    return {"word_embedding": jnp.asarray(emb),
            "conv_weight": jnp.asarray(w),
            "conv_bias": jnp.asarray(b)}


def apcnn_forward(params, inputs, *, batch_tile=None, use_bf16=False):
    """inputs: (B, L) int32 word ids. Returns (B, D) float32 pooled features."""
    emb = params["word_embedding"]                  # (V, D)
    w = params["conv_weight"]                       # (D_out, D_in, 1)
    b = params["conv_bias"]                         # (D,)
    V, D = emb.shape
    B, L = inputs.shape

    # ---- wrapper-side padding for TPU layout (lane = 128, sublane = 8) ----
    d_pad = _round_up(max(D, 128), 128)             # lane-dense output / MXU K,N
    v_pad = _round_up(V, 128)                       # aligned gather-matmul K
    l_pad = _round_up(L, 8)                         # free in-kernel reshapes

    cdt = jnp.bfloat16 if use_bf16 else jnp.float32

    emb_p = jnp.pad(emb.astype(cdt), ((0, v_pad - V), (0, d_pad - D)))
    # Pre-transpose the 1x1 conv weight -> plain (M,K)@(K,N), no in-kernel RHS
    # transpose synthesized by Mosaic.
    w_t = jnp.transpose(w[:, :, 0], (1, 0))         # (D_in, D_out)
    w_p = jnp.pad(w_t.astype(cdt), ((0, d_pad - D), (0, d_pad - D)))
    b_p = jnp.pad(b.astype(jnp.float32), (0, d_pad - D)).reshape(1, d_pad)

    # ---- batch tile: fill the MXU M dim, keep f32 intermediates to a few MiB ----
    if batch_tile is None:
        rows_target = min(512, max(l_pad, (2 * 1024 * 1024) // (4 * d_pad)))
        batch_tile = max(1, rows_target // l_pad)
    tb = max(8, _round_up(min(batch_tile, max(B, 1)), 8))
    b_pad = _round_up(B, tb)
    grid = (b_pad // tb,)
    rows_tile = tb * l_pad

    ids_p = jnp.pad(inputs.astype(jnp.int32), ((0, b_pad - B), (0, l_pad - L)))
    # Pre-flatten to (rows, 1): ids land sublane-major, exactly the orientation
    # the in-kernel one-hot compare wants (no relayout inside the kernel).
    ids_flat = ids_p.reshape(b_pad * l_pad, 1)

    itemsize = jnp.dtype(cdt).itemsize
    cost = pl.CostEstimate(
        flops=2 * b_pad * l_pad * (v_pad + d_pad) * d_pad,
        transcendentals=b_pad * l_pad * d_pad,
        bytes_accessed=(ids_flat.size * 4 + emb_p.size * itemsize
                        + w_p.size * itemsize + b_p.size * 4
                        + b_pad * d_pad * 4))

    kernel = _make_apcnn_kernel(tb, l_pad, L, v_pad, d_pad)

    out = pl.pallas_call(
        kernel,
        out_shape=jax.ShapeDtypeStruct((b_pad, d_pad), jnp.float32),
        grid_spec=pltpu.PrefetchScalarGridSpec(
            num_scalar_prefetch=0,
            grid=grid,
            in_specs=[
                pl.BlockSpec((rows_tile, 1), lambda i: (i, 0)),     # word ids (streamed)
                pl.BlockSpec((v_pad, d_pad), lambda i: (0, 0)),     # emb table (resident)
                pl.BlockSpec((d_pad, d_pad), lambda i: (0, 0)),     # conv weight (resident)
                pl.BlockSpec((1, d_pad), lambda i: (0, 0)),         # conv bias (resident)
            ],
            out_specs=pl.BlockSpec((tb, d_pad), lambda i: (i, 0)),  # pooled rows only
        ),
        compiler_params=pltpu.CompilerParams(
            dimension_semantics=("parallel",)),
        cost_estimate=cost,
    )(ids_flat, emb_p, w_p, b_p)
    # TODO(synk): for very long sequences add a second ("arbitrary") grid axis over
    # L with a (tb, d_pad) accumulator scratch so VMEM is bounded independent of L.
    return out[:B, :D]


def apcnn_reference(params, inputs):
    # Pure-JAX reference mirroring the PyTorch forward.
    emb = params["word_embedding"][inputs]              # (B, L, D)
    w = params["conv_weight"][:, :, 0]                  # (D_out, D_in)
    b = params["conv_bias"]
    conv = jnp.einsum("bld,od->blo", emb, w) + b        # (B, L, D_out)
    return jnp.sum(jnp.tanh(conv), axis=1)              # (B, D_out)


if __name__ == "__main__":
    EMBED_DIM, N_WORD = 32, 50
    BOUND = 6.0 / np.sqrt(EMBED_DIM)
    BATCH, SEQ = 4, 16

    params = init_params(EMBED_DIM, N_WORD, BOUND)

    key = jax.random.PRNGKey(0)
    # Word ids in [0, n_word]; index n_word is the (non-zeroed) padding row.
    inputs = jax.random.randint(key, (BATCH, SEQ), 0, N_WORD + 1, dtype=jnp.int32)

    out = apcnn_forward(params, inputs)
    out = jax.block_until_ready(out)

    assert out.shape == (BATCH, EMBED_DIM), out.shape
    assert bool(jnp.all(jnp.isfinite(out))), "non-finite output"

    ref = apcnn_reference(params, inputs)
    np.testing.assert_allclose(np.asarray(out), np.asarray(ref),
                               rtol=1e-4, atol=1e-4)
    print("KERNEL_OK")
</pallas_src>

<mosaic_0001>
module attributes {stable_mosaic.version = 11 : i64} {
  func.func @kernel(%arg0: i32, %arg1: memref<128x1xi32, #tpu.memory_space<vmem>>, %arg2: memref<128x128xf32, #tpu.memory_space<vmem>>, %arg3: memref<128x128xf32, #tpu.memory_space<vmem>>, %arg4: memref<1x128xf32, #tpu.memory_space<vmem>>, %arg5: memref<8x128xf32, #tpu.memory_space<vmem>>) attributes {dimension_semantics = [#tpu.dimension_semantics<parallel>], iteration_bounds = array<i64: 1>, scalar_prefetch = 0 : i64, scratch_operands = 0 : i64, tpu.core_type = #tpu.core_type<tc>, window_params = [{transform_indices = @transform_0, window_bounds = array<i64: 128, 1>}, {pipeline_mode = #tpu.pipeline_mode<synchronous>, transform_indices = @transform_1, window_bounds = array<i64: 128, 128>}, {pipeline_mode = #tpu.pipeline_mode<synchronous>, transform_indices = @transform_2, window_bounds = array<i64: 128, 128>}, {pipeline_mode = #tpu.pipeline_mode<synchronous>, transform_indices = @transform_3, window_bounds = array<i64: 1, 128>}, {transform_indices = @transform_4, window_bounds = array<i64: 8, 128>}]} {
    %c0 = arith.constant 0 : index
    %c0_0 = arith.constant 0 : index
    %0 = vector.load %arg1[%c0, %c0_0] : memref<128x1xi32, #tpu.memory_space<vmem>>, vector<128x1xi32>
    %1 = tpu.iota {dimensions = array<i32: 1>} : vector<128x128xi32>
    %2 = vector.broadcast %0 : vector<128x1xi32> to vector<128x128xi32>
    %3 = arith.cmpi eq, %2, %1 : vector<128x128xi32>
    %4 = arith.extui %3 : vector<128x128xi1> to vector<128x128xi32>
    %5 = arith.sitofp %4 : vector<128x128xi32> to vector<128x128xf32>
    %c0_1 = arith.constant 0 : index
    %c0_2 = arith.constant 0 : index
    %6 = vector.load %arg2[%c0_1, %c0_2] : memref<128x128xf32, #tpu.memory_space<vmem>>, vector<128x128xf32>
    %cst = arith.constant dense<0.000000e+00> : vector<128x128xf32>
    %7 = tpu.matmul %5, %6, %cst {dimension_numbers = #tpu.dot_dimension_numbers<[1], [0], [0], [1], [0, 0, 1, 1], [], []>} : vector<128x128xf32>, vector<128x128xf32>, vector<128x128xf32> -> vector<128x128xf32>
    %c0_3 = arith.constant 0 : index
    %c0_4 = arith.constant 0 : index
    %8 = vector.load %arg3[%c0_3, %c0_4] : memref<128x128xf32, #tpu.memory_space<vmem>>, vector<128x128xf32>
    %cst_5 = arith.constant dense<0.000000e+00> : vector<128x128xf32>
    %9 = tpu.matmul %7, %8, %cst_5 {dimension_numbers = #tpu.dot_dimension_numbers<[1], [0], [0], [1], [0, 0, 1, 1], [], []>} : vector<128x128xf32>, vector<128x128xf32>, vector<128x128xf32> -> vector<128x128xf32>
    %c0_6 = arith.constant 0 : index
    %c0_7 = arith.constant 0 : index
    %10 = vector.load %arg4[%c0_6, %c0_7] : memref<1x128xf32, #tpu.memory_space<vmem>>, vector<1x128xf32>
    %11 = vector.broadcast %10 : vector<1x128xf32> to vector<128x128xf32>
    %12 = arith.addf %9, %11 : vector<128x128xf32>
    %13 = math.tanh %12 : vector<128x128xf32>
    %14 = vector.shape_cast %13 : vector<128x128xf32> to vector<8x16x128xf32>
    %cst_8 = arith.constant dense<0.000000e+00> : vector<8x128xf32>
    %15 = vector.multi_reduction <add>, %14, %cst_8 [1] : vector<8x16x128xf32> to vector<8x128xf32>
    %c0_9 = arith.constant 0 : index
    %c0_10 = arith.constant 0 : index
    %16 = vector.load %arg5[%c0_9, %c0_10] : memref<8x128xf32, #tpu.memory_space<vmem>>, vector<8x128xf32>
    tpu.vector_store %arg5[%c0_9, %c0_10], %15 {strides = array<i32>} : memref<8x128xf32, #tpu.memory_space<vmem>>, vector<8x128xf32>,
    return
  }
  func.func @transform_0(%arg0: i32) -> (i32, i32) {
    %c0_i32 = arith.constant 0 : i32
    %c0_i32_0 = arith.constant 0 : i32
    return %arg0, %c0_i32 : i32, i32
  }
  func.func @transform_1(%arg0: i32) -> (i32, i32) {
    %c0_i32 = arith.constant 0 : i32
    %c0_i32_0 = arith.constant 0 : i32
    %c0_i32_1 = arith.constant 0 : i32
    return %c0_i32, %c0_i32_0 : i32, i32
  }
  func.func @transform_2(%arg0: i32) -> (i32, i32) {
    %c0_i32 = arith.constant 0 : i32
    %c0_i32_0 = arith.constant 0 : i32
    %c0_i32_1 = arith.constant 0 : i32
    return %c0_i32, %c0_i32_0 : i32, i32
  }
  func.func @transform_3(%arg0: i32) -> (i32, i32) {
    %c0_i32 = arith.constant 0 : i32
    %c0_i32_0 = arith.constant 0 : i32
    %c0_i32_1 = arith.constant 0 : i32
    return %c0_i32, %c0_i32_0 : i32, i32
  }
  func.func @transform_4(%arg0: i32) -> (i32, i32) {
    %c0_i32 = arith.constant 0 : i32
    %c0_i32_0 = arith.constant 0 : i32
    return %arg0, %c0_i32 : i32, i32
  }
}

</mosaic_0001>

<llo_original>
// kernel: tpu_custom_call.1
$region0: #{tpu_custom_call.1}
  #allocation0 [shape = 'u32[]', space=smem, size = 0x4, offset = 0x4, fixed_abs, tag = 'smem constant byte address 0x4 - core index']
  #allocation1 [shape = 'u32[144,128]{1,0:T(1,128)}', space=vmem, size = 0x12000, scoped, tag = 'internal scratch']
  %s0 = inlined_call_operand.vmem [shape: s32[128,1], index: 0, kind: input, shape index: {}]
  %s1 = inlined_call_operand.vmem [shape: f32[128,128], index: 1, kind: input, shape index: {}]
  %s2 = inlined_call_operand.hbm [shape: f32[128,128], index: 2, kind: input, shape index: {}]
  %s3 = inlined_call_operand.vmem [shape: f32[1,128], index: 3, kind: input, shape index: {}]
  %s4 = inlined_call_operand.hbm [shape: f32[8,128], index: 4, kind: output, shape index: {}]
  %s5 = sld [smem:[#allocation0]]
  $region30: #{tpu_custom_call.1} parent=0
    _
  %s7 = ssub.s32 1, %s5
  %s8 = scalar_select 0, %s7, %s5
  $region1: #{tpu_custom_call.1} parent=0
    #allocation2 [shape = 'u8[65536]{0}', space=vmem, size = 0x10000, scoped, tag = 'input window, operand 2, single buffered']
    #allocation3 [shape = 's32[1]{0}', space=sflag, size = 0x4, scoped, tag = 'scoped memory for tpu_custom_call.1']
    #allocation4 [shape = 's32[1]{0}', space=sflag, size = 0x4, scoped, tag = 'scoped memory for tpu_custom_call.1']
    #allocation5 [shape = 'u8[4096]{0}', space=vmem, size = 0x1000, scoped, tag = 'output window, operand 0, single buffered']
    %9 = vsyncpa [#allocation3], 0
    %10 = vsyncpa [#allocation4], 0
    // Predicated region
    $region2: #{tpu_custom_call.1} parent=1 // pred_check
      _
    $region3: #{tpu_custom_call.1} parent=1 // pred_check_branch
      %12 = sbr.rel (0) target = $region5
    $region4: #{tpu_custom_call.1} parent=1 // pred_region
      _
    $region5: #{tpu_custom_call.1} parent=1 // pred_fallthru
      _
    // Predicated region
    $region6: #{tpu_custom_call.1} parent=1 // pred_check
      _
    $region7: #{tpu_custom_call.1} parent=1 // pred_check_branch
      %14 = sbr.rel (0) target = $region9
    $region8: #{tpu_custom_call.1} parent=1 // pred_region
      _
    $region9: #{tpu_custom_call.1} parent=1 // pred_fallthru
      _
    // Predicated region
    $region10: #{tpu_custom_call.1} parent=1 // pred_check
      _
    $region11: #{tpu_custom_call.1} parent=1 // pred_check_branch
      %16 = sbr.rel (0) target = $region13
    $region12: #{tpu_custom_call.1} parent=1 // pred_region
      %s18 = ssub.s32 2048, 2048
      %19 = vsyncadd [#allocation3], %s18
      %s20 = sshll.u32 [#allocation2], 4
      %s21 = int_to_ptr.vmem [resolvable:$true] %s20
      %26 = dma.hbm_to_vmem [thread:$0]  %s2, 2048, %s21, [#allocation3], 128, 128, 8
    $region13: #{tpu_custom_call.1} parent=1 // pred_fallthru
      _
    // Predicated region
    $region14: #{tpu_custom_call.1} parent=1 // pred_check
      _
    $region15: #{tpu_custom_call.1} parent=1 // pred_check_branch
      %28 = sbr.rel (0) target = $region17
    $region16: #{tpu_custom_call.1} parent=1 // pred_region
      _
    $region17: #{tpu_custom_call.1} parent=1 // pred_fallthru
      _
    // Predicated region
    $region18: #{tpu_custom_call.1} parent=1 // pred_check
      _
    $region19: #{tpu_custom_call.1} parent=1 // pred_check_branch
      %30 = sbr.rel (0) target = $region21
    $region20: #{tpu_custom_call.1} parent=1 // pred_region
      %31 = dma.done [#allocation3], 2048
    $region21: #{tpu_custom_call.1} parent=1 // pred_fallthru
      _
    %v32 = vld [vmem:[%s0] sm:$0xff]
    %v33 = vld [vmem:[%s0 + $0x8] sm:$0xff]
    %v34 = vld [vmem:[%s0 + $0x10] sm:$0xff]
    %v35 = vld [vmem:[%s0 + $0x18] sm:$0xff]
    %v36 = vld [vmem:[%s0 + $0x20] sm:$0xff]
    %v37 = vld [vmem:[%s0 + $0x28] sm:$0xff]
    %v38 = vld [vmem:[%s0 + $0x30] sm:$0xff]
    %v39 = vld [vmem:[%s0 + $0x38] sm:$0xff]
    %v40 = vld [vmem:[%s0 + $0x40] sm:$0xff]
    %v41 = vld [vmem:[%s0 + $0x48] sm:$0xff]
    %v42 = vld [vmem:[%s0 + $0x50] sm:$0xff]
    %v43 = vld [vmem:[%s0 + $0x58] sm:$0xff]
    %v44 = vld [vmem:[%s0 + $0x60] sm:$0xff]
    %v45 = vld [vmem:[%s0 + $0x68] sm:$0xff]
    %v46 = vld [vmem:[%s0 + $0x70] sm:$0xff]
    %v47 = vld [vmem:[%s0 + $0x78] sm:$0xff]
    %v48 = vlaneseq
    %v49 = vand.u32 %v48, 127
    %50 = vset.pattern.permute.xlu0 0
    %51 = vperm.xlu0 %50, %v32
    %v52 = vpop.permute.xlu0 %51
    %53 = vset.pattern.permute.xlu0 0
    %54 = vperm.xlu0 %53, %v33
    %v55 = vpop.permute.xlu0 %54
    %56 = vset.pattern.permute.xlu0 0
    %57 = vperm.xlu0 %56, %v34
    %v58 = vpop.permute.xlu0 %57
    %59 = vset.pattern.permute.xlu0 0
    %60 = vperm.xlu0 %59, %v35
    %v61 = vpop.permute.xlu0 %60
    %62 = vset.pattern.permute.xlu0 0
    %63 = vperm.xlu0 %62, %v36
    %v64 = vpop.permute.xlu0 %63
    %65 = vset.pattern.permute.xlu0 0
    %66 = vperm.xlu0 %65, %v37
    %v67 = vpop.permute.xlu0 %66
    %68 = vset.pattern.permute.xlu0 0
    %69 = vperm.xlu0 %68, %v38
    %v70 = vpop.permute.xlu0 %69
    %71 = vset.pattern.permute.xlu0 0
    %72 = vperm.xlu0 %71, %v39
    %v73 = vpop.permute.xlu0 %72
    %74 = vset.pattern.permute.xlu0 0
    %75 = vperm.xlu0 %74, %v40
    %v76 = vpop.permute.xlu0 %75
    %77 = vset.pattern.permute.xlu0 0
    %78 = vperm.xlu0 %77, %v41
    %v79 = vpop.permute.xlu0 %78
    %80 = vset.pattern.permute.xlu0 0
    %81 = vperm.xlu0 %80, %v42
    %v82 = vpop.permute.xlu0 %81
    %83 = vset.pattern.permute.xlu0 0
    %84 = vperm.xlu0 %83, %v43
    %v85 = vpop.permute.xlu0 %84
    %86 = vset.pattern.permute.xlu0 0
    %87 = vperm.xlu0 %86, %v44
    %v88 = vpop.permute.xlu0 %87
    %89 = vset.pattern.permute.xlu0 0
    %90 = vperm.xlu0 %89, %v45
    %v91 = vpop.permute.xlu0 %90
    %92 = vset.pattern.permute.xlu0 0
    %93 = vperm.xlu0 %92, %v46
    %v94 = vpop.permute.xlu0 %93
    %95 = vset.pattern.permute.xlu0 0
    %96 = vperm.xlu0 %95, %v47
    %v97 = vpop.permute.xlu0 %96
    %vm98 = vcmp.eq.s32.totalorder %v52, %v49
    %vm99 = vcmp.eq.s32.totalorder %v55, %v49
    %vm100 = vcmp.eq.s32.totalorder %v58, %v49
    %vm101 = vcmp.eq.s32.totalorder %v61, %v49
    %vm102 = vcmp.eq.s32.totalorder %v64, %v49
    %vm103 = vcmp.eq.s32.totalorder %v67, %v49
    %vm104 = vcmp.eq.s32.totalorder %v70, %v49
    %vm105 = vcmp.eq.s32.totalorder %v73, %v49
    %vm106 = vcmp.eq.s32.totalorder %v76, %v49
    %vm107 = vcmp.eq.s32.totalorder %v79, %v49
    %vm108 = vcmp.eq.s32.totalorder %v82, %v49
    %vm109 = vcmp.eq.s32.totalorder %v85, %v49
    %vm110 = vcmp.eq.s32.totalorder %v88, %v49
    %vm111 = vcmp.eq.s32.totalorder %v91, %v49
    %vm112 = vcmp.eq.s32.totalorder %v94, %v49
    %vm113 = vcmp.eq.s32.totalorder %v97, %v49
    %v114 = vsel %vm98, 1, 0
    %v115 = vsel %vm99, 1, 0
    %v116 = vsel %vm100, 1, 0
    %v117 = vsel %vm101, 1, 0
    %v118 = vsel %vm102, 1, 0
    %v119 = vsel %vm103, 1, 0
    %v120 = vsel %vm104, 1, 0
    %v121 = vsel %vm105, 1, 0
    %v122 = vsel %vm106, 1, 0
    %v123 = vsel %vm107, 1, 0
    %v124 = vsel %vm108, 1, 0
    %v125 = vsel %vm109, 1, 0
    %v126 = vsel %vm110, 1, 0
    %v127 = vsel %vm111, 1, 0
    %v128 = vsel %vm112, 1, 0
    %v129 = vsel %vm113, 1, 0
    %v130 = vcvt.s32.f32 %v114
    %v131 = vcvt.s32.f32 %v115
    %v132 = vcvt.s32.f32 %v116
    %v133 = vcvt.s32.f32 %v117
    %v134 = vcvt.s32.f32 %v118
    %v135 = vcvt.s32.f32 %v119
    %v136 = vcvt.s32.f32 %v120
    %v137 = vcvt.s32.f32 %v121
    %v138 = vcvt.s32.f32 %v122
    %v139 = vcvt.s32.f32 %v123
    %v140 = vcvt.s32.f32 %v124
    %v141 = vcvt.s32.f32 %v125
    %v142 = vcvt.s32.f32 %v126
    %v143 = vcvt.s32.f32 %v127
    %v144 = vcvt.s32.f32 %v128
    %v145 = vcvt.s32.f32 %v129
    %v146 = vld [vmem:[%s1] sm:$0xff]
    %v147 = vld [vmem:[%s1 + $0x8] sm:$0xff]
    %v148 = vld [vmem:[%s1 + $0x10] sm:$0xff]
    %v149 = vld [vmem:[%s1 + $0x18] sm:$0xff]
    %v150 = vld [vmem:[%s1 + $0x20] sm:$0xff]
    %v151 = vld [vmem:[%s1 + $0x28] sm:$0xff]
    %v152 = vld [vmem:[%s1 + $0x30] sm:$0xff]
    %v153 = vld [vmem:[%s1 + $0x38] sm:$0xff]
    %v154 = vld [vmem:[%s1 + $0x40] sm:$0xff]
    %v155 = vld [vmem:[%s1 + $0x48] sm:$0xff]
    %v156 = vld [vmem:[%s1 + $0x50] sm:$0xff]
    %v157 = vld [vmem:[%s1 + $0x58] sm:$0xff]
    %v158 = vld [vmem:[%s1 + $0x60] sm:$0xff]
    %v159 = vld [vmem:[%s1 + $0x68] sm:$0xff]
    %v160 = vld [vmem:[%s1 + $0x70] sm:$0xff]
    %v161 = vld [vmem:[%s1 + $0x78] sm:$0xff]
    %162 = vmatprep.subr.mxu0 0.0
    %163 = vmatpush1.msra.mxu0 %v146
    %164 = vmatprep.subr.mxu0 0.0
    %165 = vmatpush1.msra.mxu0 %v147
    %166 = vmatprep.subr.mxu0 0.0
    %167 = vmatpush1.msra.mxu0 %v148
    %168 = vmatprep.subr.mxu0 0.0
    %169 = vmatpush1.msra.mxu0 %v149
    %170 = vmatprep.subr.mxu0 0.0
    %171 = vmatpush1.msra.mxu0 %v150
    %172 = vmatprep.subr.mxu0 0.0
    %173 = vmatpush1.msra.mxu0 %v151
    %174 = vmatprep.subr.mxu0 0.0
    %175 = vmatpush1.msra.mxu0 %v152
    %176 = vmatprep.subr.mxu0 0.0
    %177 = vmatpush1.msra.mxu0 %v153
    %178 = vmatprep.subr.mxu0 0.0
    %179 = vmatpush1.msra.mxu0 %v154
    %180 = vmatprep.subr.mxu0 0.0
    %181 = vmatpush1.msra.mxu0 %v155
    %182 = vmatprep.subr.mxu0 0.0
    %183 = vmatpush1.msra.mxu0 %v156
    %184 = vmatprep.subr.mxu0 0.0
    %185 = vmatpush1.msra.mxu0 %v157
    %186 = vmatprep.subr.mxu0 0.0
    %187 = vmatpush1.msra.mxu0 %v158
    %188 = vmatprep.subr.mxu0 0.0
    %189 = vmatpush1.msra.mxu0 %v159
    %190 = vmatprep.subr.mxu0 0.0
    %191 = vmatpush1.msra.mxu0 %v160
    %192 = vmatprep.subr.mxu0 0.0
    %193 = vmatpush1.msra.mxu0 %v161
    %194 = vmatprep.subr.mxu0 0.0
    %195 = vmatpush1.msra.mxu0 0.0
    %196 = vmatprep.subr.mxu0 0.0
    %197 = vmatpush1.msra.mxu0 0.0
    %198 = vmatprep.subr.mxu0 0.0
    %199 = vmatpush1.msra.mxu0 0.0
    %200 = vmatprep.subr.mxu0 0.0
    %201 = vmatpush1.msra.mxu0 0.0
    %202 = vmatprep.subr.mxu0 0.0
    %203 = vmatpush1.msra.mxu0 0.0
    %204 = vmatprep.subr.mxu0 0.0
    %205 = vmatpush1.msra.mxu0 0.0
    %206 = vmatprep.subr.mxu0 0.0
    %207 = vmatpush1.msra.mxu0 0.0
    %208 = vmatprep.subr.mxu0 0.0
    %209 = vmatpush1.msra.mxu0 0.0
    %210 = vmatprep.subr.mxu0 0.0
    %211 = vmatpush1.msra.mxu0 0.0
    %212 = vmatprep.subr.mxu0 0.0
    %213 = vmatpush1.msra.mxu0 0.0
    %214 = vmatprep.subr.mxu0 0.0
    %215 = vmatpush1.msra.mxu0 0.0
    %216 = vmatprep.subr.mxu0 0.0
    %217 = vmatpush1.msra.mxu0 0.0
    %218 = vmatprep.subr.mxu0 0.0
    %219 = vmatpush1.msra.mxu0 0.0
    %220 = vmatprep.subr.mxu0 0.0
    %221 = vmatpush1.msra.mxu0 0.0
    %222 = vmatprep.subr.mxu0 0.0
    %223 = vmatpush1.msra.mxu0 0.0
    %224 = vmatprep.subr.mxu0 0.0
    %225 = vmatpush1.msra.mxu0 0.0
    %226 = vmatprep.mubr.f32.mxu0 0.0
    %227 = vmatmul.mubr.f32.gmra.mrb[0].mxu0 %v130
    %v228 = vpop.f32.mrb[0].mxu0
    %v229 = vadd.f32 0.0, %v228
    %v230 = vpop.f32.mrb[0].mxu0
    %231 = vmatprep.mubr.f32.mxu0 0.0
    %232 = vmatmul.mubr.f32.gmra.mrb[0].mxu0 %v131
    %v233 = vpop.f32.mrb[0].mxu0
    %v234 = vadd.f32 0.0, %v233
    %v235 = vpop.f32.mrb[0].mxu0
    %236 = vmatprep.mubr.f32.mxu0 0.0
    %237 = vmatmul.mubr.f32.gmra.mrb[0].mxu0 %v132
    %v238 = vpop.f32.mrb[0].mxu0
    %v239 = vadd.f32 0.0, %v238
    %v240 = vpop.f32.mrb[0].mxu0
    %241 = vmatprep.mubr.f32.mxu0 0.0
    %242 = vmatmul.mubr.f32.gmra.mrb[0].mxu0 %v133
    %v243 = vpop.f32.mrb[0].mxu0
    %v244 = vadd.f32 0.0, %v243
    %v245 = vpop.f32.mrb[0].mxu0
    %246 = vmatprep.mubr.f32.mxu0 0.0
    %247 = vmatmul.mubr.f32.gmra.mrb[0].mxu0 %v134
    %v248 = vpop.f32.mrb[0].mxu0
    %v249 = vadd.f32 0.0, %v248
    %v250 = vpop.f32.mrb[0].mxu0
    %251 = vmatprep.mubr.f32.mxu0 0.0
    %252 = vmatmul.mubr.f32.gmra.mrb[0].mxu0 %v135
    %v253 = vpop.f32.mrb[0].mxu0
    %v254 = vadd.f32 0.0, %v253
    %v255 = vpop.f32.mrb[0].mxu0
    %256 = vmatprep.mubr.f32.mxu0 0.0
    %257 = vmatmul.mubr.f32.gmra.mrb[0].mxu0 %v136
    %v258 = vpop.f32.mrb[0].mxu0
    %v259 = vadd.f32 0.0, %v258
    %v260 = vpop.f32.mrb[0].mxu0
    %261 = vmatprep.mubr.f32.mxu0 0.0
    %262 = vmatmul.mubr.f32.gmra.mrb[0].mxu0 %v137
    %v263 = vpop.f32.mrb[0].mxu0
    %v264 = vadd.f32 0.0, %v263
    %v265 = vpop.f32.mrb[0].mxu0
    %266 = vmatprep.mubr.f32.mxu0 0.0
    %267 = vmatmul.mubr.f32.gmra.mrb[0].mxu0 %v138
    %v268 = vpop.f32.mrb[0].mxu0
    %v269 = vadd.f32 0.0, %v268
    %v270 = vpop.f32.mrb[0].mxu0
    %271 = vmatprep.mubr.f32.mxu0 0.0
    %272 = vmatmul.mubr.f32.gmra.mrb[0].mxu0 %v139
    %v273 = vpop.f32.mrb[0].mxu0
    %v274 = vadd.f32 0.0, %v273
    %v275 = vpop.f32.mrb[0].mxu0
    %276 = vmatprep.mubr.f32.mxu0 0.0
    %277 = vmatmul.mubr.f32.gmra.mrb[0].mxu0 %v140
    %v278 = vpop.f32.mrb[0].mxu0
    %v279 = vadd.f32 0.0, %v278
    %v280 = vpop.f32.mrb[0].mxu0
    %281 = vmatprep.mubr.f32.mxu0 0.0
    %282 = vmatmul.mubr.f32.gmra.mrb[0].mxu0 %v141
    %v283 = vpop.f32.mrb[0].mxu0
    %v284 = vadd.f32 0.0, %v283
    %v285 = vpop.f32.mrb[0].mxu0
    %286 = vmatprep.mubr.f32.mxu0 0.0
    %287 = vmatmul.mubr.f32.gmra.mrb[0].mxu0 %v142
    %v288 = vpop.f32.mrb[0].mxu0
    %v289 = vadd.f32 0.0, %v288
    %v290 = vpop.f32.mrb[0].mxu0
    %291 = vmatprep.mubr.f32.mxu0 0.0
    %292 = vmatmul.mubr.f32.gmra.mrb[0].mxu0 %v143
    %v293 = vpop.f32.mrb[0].mxu0
    %v294 = vadd.f32 0.0, %v293
    %v295 = vpop.f32.mrb[0].mxu0
    %296 = vmatprep.mubr.f32.mxu0 0.0
    %297 = vmatmul.mubr.f32.gmra.mrb[0].mxu0 %v144
    %v298 = vpop.f32.mrb[0].mxu0
    %v299 = vadd.f32 0.0, %v298
    %v300 = vpop.f32.mrb[0].mxu0
    %301 = vmatprep.mubr.f32.mxu0 0.0
    %302 = vmatmul.mubr.f32.gmra.mrb[0].mxu0 %v145
    %v303 = vpop.f32.mrb[0].mxu0
    %v304 = vadd.f32 0.0, %v303
    %v305 = vpop.f32.mrb[0].mxu0
    %306 = vdwg.mxu0
    %v307 = vld [vmem:[#allocation2] sm:$0xff]
    %v308 = vld [vmem:[#allocation2 + $0x8] sm:$0xff]
    %v309 = vld [vmem:[#allocation2 + $0x10] sm:$0xff]
    %v310 = vld [vmem:[#allocation2 + $0x18] sm:$0xff]
    %v311 = vld [vmem:[#allocation2 + $0x20] sm:$0xff]
    %v312 = vld [vmem:[#allocation2 + $0x28] sm:$0xff]
    %v313 = vld [vmem:[#allocation2 + $0x30] sm:$0xff]
    %v314 = vld [vmem:[#allocation2 + $0x38] sm:$0xff]
    %v315 = vld [vmem:[#allocation2 + $0x40] sm:$0xff]
    %v316 = vld [vmem:[#allocation2 + $0x48] sm:$0xff]
    %v317 = vld [vmem:[#allocation2 + $0x50] sm:$0xff]
    %v318 = vld [vmem:[#allocation2 + $0x58] sm:$0xff]
    %v319 = vld [vmem:[#allocation2 + $0x60] sm:$0xff]
    %v320 = vld [vmem:[#allocation2 + $0x68] sm:$0xff]
    %v321 = vld [vmem:[#allocation2 + $0x70] sm:$0xff]
    %v322 = vld [vmem:[#allocation2 + $0x78] sm:$0xff]
    %v323 = vld [vmem:[%s3] sm:$0x1]
    %v325 = vlaneseq
    %v326 = vshrl.u32 %v325, 7
    %v327 = vsub.s32 0, %v326
    %v328 = vrot.slane %v323, %v327
    %330 = vmatprep.subr.mxu0 0.0
    %331 = vmatpush1.msra.mxu0 %v307
    %332 = vmatprep.subr.mxu0 0.0
    %333 = vmatpush1.msra.mxu0 %v308
    %334 = vmatprep.subr.mxu0 0.0
    %335 = vmatpush1.msra.mxu0 %v309
    %336 = vmatprep.subr.mxu0 0.0
    %337 = vmatpush1.msra.mxu0 %v310
    %338 = vmatprep.subr.mxu0 0.0
    %339 = vmatpush1.msra.mxu0 %v311
    %340 = vmatprep.subr.mxu0 0.0
    %341 = vmatpush1.msra.mxu0 %v312
    %342 = vmatprep.subr.mxu0 0.0
    %343 = vmatpush1.msra.mxu0 %v313
    %344 = vmatprep.subr.mxu0 0.0
    %345 = vmatpush1.msra.mxu0 %v314
    %346 = vmatprep.subr.mxu0 0.0
    %347 = vmatpush1.msra.mxu0 %v315
    %348 = vmatprep.subr.mxu0 0.0
    %349 = vmatpush1.msra.mxu0 %v316
    %350 = vmatprep.subr.mxu0 0.0
    %351 = vmatpush1.msra.mxu0 %v317
    %352 = vmatprep.subr.mxu0 0.0
    %353 = vmatpush1.msra.mxu0 %v318
    %354 = vmatprep.subr.mxu0 0.0
    %355 = vmatpush1.msra.mxu0 %v319
    %356 = vmatprep.subr.mxu0 0.0
    %357 = vmatpush1.msra.mxu0 %v320
    %358 = vmatprep.subr.mxu0 0.0
    %359 = vmatpush1.msra.mxu0 %v321
    %360 = vmatprep.subr.mxu0 0.0
    %361 = vmatpush1.msra.mxu0 %v322
    %362 = vmatprep.subr.mxu0 0.0
    %363 = vmatpush1.msra.mxu0 0.0
    %364 = vmatprep.subr.mxu0 0.0
    %365 = vmatpush1.msra.mxu0 0.0
    %366 = vmatprep.subr.mxu0 0.0
    %367 = vmatpush1.msra.mxu0 0.0
    %368 = vmatprep.subr.mxu0 0.0
    %369 = vmatpush1.msra.mxu0 0.0
    %370 = vmatprep.subr.mxu0 0.0
    %371 = vmatpush1.msra.mxu0 0.0
    %372 = vmatprep.subr.mxu0 0.0
    %373 = vmatpush1.msra.mxu0 0.0
    %374 = vmatprep.subr.mxu0 0.0
    %375 = vmatpush1.msra.mxu0 0.0
    %376 = vmatprep.subr.mxu0 0.0
    %377 = vmatpush1.msra.mxu0 0.0
    %378 = vmatprep.subr.mxu0 0.0
    %379 = vmatpush1.msra.mxu0 0.0
    %380 = vmatprep.subr.mxu0 0.0
    %381 = vmatpush1.msra.mxu0 0.0
    %382 = vmatprep.subr.mxu0 0.0
    %383 = vmatpush1.msra.mxu0 0.0
    %384 = vmatprep.subr.mxu0 0.0
    %385 = vmatpush1.msra.mxu0 0.0
    %386 = vmatprep.subr.mxu0 0.0
    %387 = vmatpush1.msra.mxu0 0.0
    %388 = vmatprep.subr.mxu0 0.0
    %389 = vmatpush1.msra.mxu0 0.0
    %390 = vmatprep.subr.mxu0 0.0
    %391 = vmatpush1.msra.mxu0 0.0
    %392 = vmatprep.subr.mxu0 0.0
    %393 = vmatpush1.msra.mxu0 0.0
    %394 = vmatprep.mubr.f32.mxu0 0.0
    %395 = vmatmul.mubr.f32.gmra.mrb[0].mxu0 %v229
    %v396 = vpop.f32.mrb[0].mxu0
    %v397 = vadd.f32 %v328, %v396
    %v398 = vpop.f32.mrb[0].mxu0
    %399 = vmatprep.mubr.f32.mxu0 0.0
    %400 = vmatmul.mubr.f32.gmra.mrb[0].mxu0 %v234
    %v401 = vpop.f32.mrb[0].mxu0
    %v402 = vadd.f32 %v328, %v401
    %v403 = vpop.f32.mrb[0].mxu0
    %404 = vmatprep.mubr.f32.mxu0 0.0
    %405 = vmatmul.mubr.f32.gmra.mrb[0].mxu0 %v239
    %v406 = vpop.f32.mrb[0].mxu0
    %v407 = vadd.f32 %v328, %v406
    %v408 = vpop.f32.mrb[0].mxu0
    %409 = vmatprep.mubr.f32.mxu0 0.0
    %410 = vmatmul.mubr.f32.gmra.mrb[0].mxu0 %v244
    %v411 = vpop.f32.mrb[0].mxu0
    %v412 = vadd.f32 %v328, %v411
    %v413 = vpop.f32.mrb[0].mxu0
    %414 = vmatprep.mubr.f32.mxu0 0.0
    %415 = vmatmul.mubr.f32.gmra.mrb[0].mxu0 %v249
    %v416 = vpop.f32.mrb[0].mxu0
    %v417 = vadd.f32 %v328, %v416
    %v418 = vpop.f32.mrb[0].mxu0
    %419 = vmatprep.mubr.f32.mxu0 0.0
    %420 = vmatmul.mubr.f32.gmra.mrb[0].mxu0 %v254
    %v421 = vpop.f32.mrb[0].mxu0
    %v422 = vadd.f32 %v328, %v421
    %v423 = vpop.f32.mrb[0].mxu0
    %424 = vmatprep.mubr.f32.mxu0 0.0
    %425 = vmatmul.mubr.f32.gmra.mrb[0].mxu0 %v259
    %v426 = vpop.f32.mrb[0].mxu0
    %v427 = vadd.f32 %v328, %v426
    %v428 = vpop.f32.mrb[0].mxu0
    %429 = vmatprep.mubr.f32.mxu0 0.0
    %430 = vmatmul.mubr.f32.gmra.mrb[0].mxu0 %v264
    %v431 = vpop.f32.mrb[0].mxu0
    %v432 = vadd.f32 %v328, %v431
    %v433 = vpop.f32.mrb[0].mxu0
    %434 = vmatprep.mubr.f32.mxu0 0.0
    %435 = vmatmul.mubr.f32.gmra.mrb[0].mxu0 %v269
    %v436 = vpop.f32.mrb[0].mxu0
    %v437 = vadd.f32 %v328, %v436
    %v438 = vpop.f32.mrb[0].mxu0
    %439 = vmatprep.mubr.f32.mxu0 0.0
    %440 = vmatmul.mubr.f32.gmra.mrb[0].mxu0 %v274
    %v441 = vpop.f32.mrb[0].mxu0
    %v442 = vadd.f32 %v328, %v441
    %v443 = vpop.f32.mrb[0].mxu0
    %444 = vmatprep.mubr.f32.mxu0 0.0
    %445 = vmatmul.mubr.f32.gmra.mrb[0].mxu0 %v279
    %v446 = vpop.f32.mrb[0].mxu0
    %v447 = vadd.f32 %v328, %v446
    %v448 = vpop.f32.mrb[0].mxu0
    %449 = vmatprep.mubr.f32.mxu0 0.0
    %450 = vmatmul.mubr.f32.gmra.mrb[0].mxu0 %v284
    %v451 = vpop.f32.mrb[0].mxu0
    %v452 = vadd.f32 %v328, %v451
    %v453 = vpop.f32.mrb[0].mxu0
    %454 = vmatprep.mubr.f32.mxu0 0.0
    %455 = vmatmul.mubr.f32.gmra.mrb[0].mxu0 %v289
    %v456 = vpop.f32.mrb[0].mxu0
    %v457 = vadd.f32 %v328, %v456
    %v458 = vpop.f32.mrb[0].mxu0
    %459 = vmatprep.mubr.f32.mxu0 0.0
    %460 = vmatmul.mubr.f32.gmra.mrb[0].mxu0 %v294
    %v461 = vpop.f32.mrb[0].mxu0
    %v462 = vadd.f32 %v328, %v461
    %v463 = vpop.f32.mrb[0].mxu0
    %464 = vmatprep.mubr.f32.mxu0 0.0
    %465 = vmatmul.mubr.f32.gmra.mrb[0].mxu0 %v299
    %v466 = vpop.f32.mrb[0].mxu0
    %v467 = vadd.f32 %v328, %v466
    %v468 = vpop.f32.mrb[0].mxu0
    %469 = vmatprep.mubr.f32.mxu0 0.0
    %470 = vmatmul.mubr.f32.gmra.mrb[0].mxu0 %v304
    %v471 = vpop.f32.mrb[0].mxu0
    %v472 = vadd.f32 %v328, %v471
    %v473 = vpop.f32.mrb[0].mxu0
    %474 = vdwg.mxu0
    %v475 = vtanh.pop %v397
    %v476 = vtanh.pop %v402
    %v477 = vtanh.pop %v407
    %v478 = vtanh.pop %v412
    %v479 = vtanh.pop %v417
    %v480 = vtanh.pop %v422
    %v481 = vtanh.pop %v427
    %v482 = vtanh.pop %v432
    %v483 = vtanh.pop %v437
    %v484 = vtanh.pop %v442
    %v485 = vtanh.pop %v447
    %v486 = vtanh.pop %v452
    %v487 = vtanh.pop %v457
    %v488 = vtanh.pop %v462
    %v489 = vtanh.pop %v467
    %v490 = vtanh.pop %v472
    %v491 = vadd.f32 %v475, %v476
    %v492 = vrot.slane %v491, 4
    %v493 = vadd.f32 %v491, %v492
    %v494 = vrot.slane %v493, 2
    %v495 = vadd.f32 %v493, %v494
    %v496 = vrot.slane %v495, 1
    %v497 = vadd.f32 %v495, %v496
    %v498 = vadd.f32 %v477, %v478
    %v499 = vrot.slane %v498, 4
    %v500 = vadd.f32 %v498, %v499
    %v501 = vrot.slane %v500, 2
    %v502 = vadd.f32 %v500, %v501
    %v503 = vrot.slane %v502, 1
    %v504 = vadd.f32 %v502, %v503
    %v505 = vadd.f32 %v479, %v480
    %v506 = vrot.slane %v505, 4
    %v507 = vadd.f32 %v505, %v506
    %v508 = vrot.slane %v507, 2
    %v509 = vadd.f32 %v507, %v508
    %v510 = vrot.slane %v509, 1
    %v511 = vadd.f32 %v509, %v510
    %v512 = vadd.f32 %v481, %v482
    %v513 = vrot.slane %v512, 4
    %v514 = vadd.f32 %v512, %v513
    %v515 = vrot.slane %v514, 2
    %v516 = vadd.f32 %v514, %v515
    %v517 = vrot.slane %v516, 1
    %v518 = vadd.f32 %v516, %v517
    %v519 = vadd.f32 %v483, %v484
    %v520 = vrot.slane %v519, 4
    %v521 = vadd.f32 %v519, %v520
    %v522 = vrot.slane %v521, 2
    %v523 = vadd.f32 %v521, %v522
    %v524 = vrot.slane %v523, 1
    %v525 = vadd.f32 %v523, %v524
    %v526 = vadd.f32 %v485, %v486
    %v527 = vrot.slane %v526, 4
    %v528 = vadd.f32 %v526, %v527
    %v529 = vrot.slane %v528, 2
    %v530 = vadd.f32 %v528, %v529
    %v531 = vrot.slane %v530, 1
    %v532 = vadd.f32 %v530, %v531
    %v533 = vadd.f32 %v487, %v488
    %v534 = vrot.slane %v533, 4
    %v535 = vadd.f32 %v533, %v534
    %v536 = vrot.slane %v535, 2
    %v537 = vadd.f32 %v535, %v536
    %v538 = vrot.slane %v537, 1
    %v539 = vadd.f32 %v537, %v538
    %v540 = vadd.f32 %v489, %v490
    %v541 = vrot.slane %v540, 4
    %v542 = vadd.f32 %v540, %v541
    %v543 = vrot.slane %v542, 2
    %v544 = vadd.f32 %v542, %v543
    %v545 = vrot.slane %v544, 1
    %v546 = vadd.f32 %v544, %v545
    %vm555 = vcmask 1041409
    %v556 = vsel %vm555, %v504, %v497
    %vm557 = vcmask 1042434
    %v558 = vsel %vm557, %v511, %v556
    %vm559 = vcmask 1043459
    %v560 = vsel %vm559, %v518, %v558
    %vm561 = vcmask 1044484
    %v562 = vsel %vm561, %v525, %v560
    %vm563 = vcmask 1045509
    %v564 = vsel %vm563, %v532, %v562
    %vm565 = vcmask 1046534
    %v566 = vsel %vm565, %v539, %v564
    %vm567 = vcmask 1047559
    %v568 = vsel %vm567, %v546, %v566
    %570 = vst [vmem:[#allocation5] sm:$0xff] %v568
    // Predicated region
    $region22: #{tpu_custom_call.1} parent=1 // pred_check
      _
    $region23: #{tpu_custom_call.1} parent=1 // pred_check_branch
      %572 = sbr.rel (0) target = $region25
    $region24: #{tpu_custom_call.1} parent=1 // pred_region
      %s574 = ssub.s32 128, 128
      %575 = vsyncadd [#allocation4], %s574
      %s577 = sshll.u32 [#allocation5], 4
      %s578 = int_to_ptr.vmem [resolvable:$true] %s577
      %580 = dma.vmem_to_hbm [thread:$0]  %s578, 128, %s4, [#allocation4]
    $region25: #{tpu_custom_call.1} parent=1 // pred_fallthru
      _
    // Predicated region
    $region26: #{tpu_custom_call.1} parent=1 // pred_check
      _
    $region27: #{tpu_custom_call.1} parent=1 // pred_check_branch
      %582 = sbr.rel (0) target = $region29
    $region28: #{tpu_custom_call.1} parent=1 // pred_region
      %583 = dma.done [#allocation4], 128
    $region29: #{tpu_custom_call.1} parent=1 // pred_fallthru
      _
    %584 = vsyncpa [#allocation3], 1
    %585 = vsyncpa [#allocation4], 1

</llo_original>
